<compile_context>
chip_gen: v5e
topology: v5e:2x2
jax: 0.10.0
libtpu: 0.0.40
codegen_flags: <defaults>
</compile_context>

<pallas_src>
import functools

import jax
import jax.numpy as jnp
from jax import lax
from jax.experimental import pallas as pl
from jax.experimental.pallas import tpu as pltpu


def _adv_loss_kernel(logits_ref, tgt_ref, loss_ref, *, kappa):
    logits = logits_ref[...]                                   # (tb, K), native dtype
    tgt = tgt_ref[...]                                         # (tb, 1), int32
    tb, k = logits.shape

    col = lax.broadcasted_iota(jnp.int32, (tb, k), 1)          # class index along lanes
    mask = col == tgt                                          # one-hot as bool mask

    zero = jnp.zeros((), logits.dtype)
    neg = jnp.asarray(-10000.0, logits.dtype)                  # sentinel, faithful to ref

    # real_logits = sum(one_hot * logits, dim=1)   (exact: single nonzero per row)
    real = jnp.sum(jnp.where(mask, logits, zero), axis=1, keepdims=True)   # (tb, 1)
    # other_logits = max((1 - one_hot) * logits - one_hot * 10000, dim=1)
    other = jnp.max(jnp.where(mask, neg, logits), axis=1, keepdims=True)   # (tb, 1)

    margin = other.astype(jnp.float32) - real.astype(jnp.float32) + jnp.float32(kappa)
    loss_ref[...] = jnp.maximum(margin, 0.0)                   # clamp(min=0), per-row


def _pick_tb(B, K, itemsize, max_block_bytes=4 << 20, max_rows=2048):
    """Largest batch tile (multiple of 8, divides B) with block <= max_block_bytes."""
    rows = max_block_bytes // max(1, K * itemsize)
    rows = min(rows, max_rows)
    rows = max((rows // 8) * 8, 8)
    if B <= rows:
        return B
    tb = rows
    while tb >= 8:
        if B % tb == 0:
            return tb
        tb -= 8
    # No multiple-of-8 divisor found below the budget; fall back to a single block.
    return B


def logits_adv_loss(logits, targets, kappa=0.0, *, tb=None):
    """Pallas implementation of LogitsAdvLoss.forward.

    Args:
      logits:  [B, K] float array.
      targets: [B] or [B, 1] integer array of attack target classes.
      kappa:   minimum margin.
    Returns:
      scalar float32 loss (mean over batch).
    """
    B, K = logits.shape
    if targets.ndim == 1:
        targets = targets.reshape(-1, 1)
    targets = targets.astype(jnp.int32)

    itemsize = jnp.dtype(logits.dtype).itemsize
    if tb is None:
        tb = _pick_tb(B, K, itemsize)
    assert B % tb == 0, "batch tile must divide B"
    assert tb % 8 == 0 or tb == B, "batch tile must be a multiple of 8 (or the full batch)"

    grid = (B // tb,)
    kernel = functools.partial(_adv_loss_kernel, kappa=float(kappa))

    cost = pl.CostEstimate(
        flops=5 * B * K,
        transcendentals=0,
        bytes_accessed=B * K * itemsize + B * 4 + B * 4,
    )
    # Double-buffered logits + targets + per-row output, plus headroom.
    vmem_need = 2 * (tb * K * itemsize + tb * 4 + tb * 4) + (2 << 20)
    vmem_limit = int(min(max(vmem_need, 16 << 20), 64 << 20))

    per_row = pl.pallas_call(
        kernel,
        out_shape=jax.ShapeDtypeStruct((B, 1), jnp.float32),
        grid_spec=pltpu.PrefetchScalarGridSpec(
            num_scalar_prefetch=0,
            grid=grid,
            in_specs=[
                pl.BlockSpec((tb, K), lambda i: (i, 0)),   # logits tile
                pl.BlockSpec((tb, 1), lambda i: (i, 0)),   # targets tile
            ],
            out_specs=pl.BlockSpec((tb, 1), lambda i: (i, 0)),
        ),
        compiler_params=pltpu.CompilerParams(
            dimension_semantics=("parallel",),             # independent batch blocks
            vmem_limit_bytes=vmem_limit,
        ),
        cost_estimate=cost,
    )(logits, targets)

    return jnp.mean(per_row)                               # .mean() over the batch


def _reference(logits, targets, kappa=0.0):
    B, K = logits.shape
    targets = targets.reshape(-1).astype(jnp.int32)
    one_hot = jax.nn.one_hot(targets, K, dtype=jnp.float32)
    logits = logits.astype(jnp.float32)
    real = jnp.sum(one_hot * logits, axis=1)
    other = jnp.max((1.0 - one_hot) * logits - one_hot * 10000.0, axis=1)
    return jnp.mean(jnp.maximum(other - real + kappa, 0.0))


if __name__ == "__main__":
    key = jax.random.PRNGKey(0)
    kappa = 0.5

    # Small primary test (single block: tb == B).
    B, K = 8, 16
    k_logits, k_tgt, k2_logits, k2_tgt = jax.random.split(key, 4)
    logits = jax.random.normal(k_logits, (B, K), dtype=jnp.float32) * 3.0
    targets = jax.random.randint(k_tgt, (B,), 0, K, dtype=jnp.int32)

    loss = jax.block_until_ready(logits_adv_loss(logits, targets, kappa=kappa))
    ref = _reference(logits, targets, kappa=kappa)
    assert jnp.allclose(loss, ref, atol=1e-5, rtol=1e-5), (loss, ref)

    # Secondary test exercising a multi-step grid (parallel batch tiling).
    B2, K2 = 32, 40
    logits2 = jax.random.normal(k2_logits, (B2, K2), dtype=jnp.float32) * 3.0
    targets2 = jax.random.randint(k2_tgt, (B2,), 0, K2, dtype=jnp.int32)

    loss2 = jax.block_until_ready(logits_adv_loss(logits2, targets2, kappa=kappa, tb=8))
    ref2 = _reference(logits2, targets2, kappa=kappa)
    assert jnp.allclose(loss2, ref2, atol=1e-5, rtol=1e-5), (loss2, ref2)

    print("KERNEL_OK")
</pallas_src>

<mosaic_0001>
module attributes {stable_mosaic.version = 11 : i64} {
  func.func @_adv_loss_kernel(%arg0: i32, %arg1: memref<8x16xf32, #tpu.memory_space<vmem>>, %arg2: memref<8x1xi32, #tpu.memory_space<vmem>>, %arg3: memref<8x1xf32, #tpu.memory_space<vmem>>) attributes {dimension_semantics = [#tpu.dimension_semantics<parallel>], iteration_bounds = array<i64: 1>, scalar_prefetch = 0 : i64, scratch_operands = 0 : i64, tpu.core_type = #tpu.core_type<tc>, window_params = [{transform_indices = @transform_0, window_bounds = array<i64: 8, 16>}, {transform_indices = @transform_1, window_bounds = array<i64: 8, 1>}, {transform_indices = @transform_2, window_bounds = array<i64: 8, 1>}]} {
    %c0 = arith.constant 0 : index
    %c0_0 = arith.constant 0 : index
    %0 = vector.load %arg1[%c0, %c0_0] : memref<8x16xf32, #tpu.memory_space<vmem>>, vector<8x16xf32>
    %c0_1 = arith.constant 0 : index
    %c0_2 = arith.constant 0 : index
    %1 = vector.load %arg2[%c0_1, %c0_2] : memref<8x1xi32, #tpu.memory_space<vmem>>, vector<8x1xi32>
    %2 = tpu.iota {dimensions = array<i32: 1>} : vector<8x16xi32>
    %3 = vector.broadcast %1 : vector<8x1xi32> to vector<8x16xi32>
    %4 = arith.cmpi eq, %2, %3 : vector<8x16xi32>
    %cst = arith.constant 0.000000e+00 : f32
    %5 = vector.broadcast %cst : f32 to vector<8x16xf32>
    %6 = arith.select %4, %0, %5 : vector<8x16xi1>, vector<8x16xf32>
    %cst_3 = arith.constant dense<0.000000e+00> : vector<8xf32>
    %7 = vector.multi_reduction <add>, %6, %cst_3 [1] : vector<8x16xf32> to vector<8xf32>
    %8 = vector.shape_cast %7 : vector<8xf32> to vector<8x1xf32>
    %cst_4 = arith.constant -1.000000e+04 : f32
    %9 = vector.broadcast %cst_4 : f32 to vector<8x16xf32>
    %10 = arith.select %4, %9, %0 : vector<8x16xi1>, vector<8x16xf32>
    %cst_5 = arith.constant dense<0xFF800000> : vector<8xf32>
    %11 = vector.multi_reduction <maximumf>, %10, %cst_5 [1] : vector<8x16xf32> to vector<8xf32>
    %12 = vector.shape_cast %11 : vector<8xf32> to vector<8x1xf32>
    %13 = arith.subf %12, %8 : vector<8x1xf32>
    %cst_6 = arith.constant 5.000000e-01 : f32
    %14 = vector.broadcast %cst_6 : f32 to vector<8x1xf32>
    %15 = arith.addf %13, %14 : vector<8x1xf32>
    %cst_7 = arith.constant 0.000000e+00 : f32
    %16 = vector.broadcast %cst_7 : f32 to vector<8x1xf32>
    %17 = arith.maximumf %15, %16 : vector<8x1xf32>
    %c0_8 = arith.constant 0 : index
    %c0_9 = arith.constant 0 : index
    %18 = vector.load %arg3[%c0_8, %c0_9] : memref<8x1xf32, #tpu.memory_space<vmem>>, vector<8x1xf32>
    tpu.vector_store %arg3[%c0_8, %c0_9], %17 {strides = array<i32>} : memref<8x1xf32, #tpu.memory_space<vmem>>, vector<8x1xf32>,
    return
  }
  func.func @transform_0(%arg0: i32) -> (i32, i32) {
    %c0_i32 = arith.constant 0 : i32
    %c0_i32_0 = arith.constant 0 : i32
    return %arg0, %c0_i32 : i32, i32
  }
  func.func @transform_1(%arg0: i32) -> (i32, i32) {
    %c0_i32 = arith.constant 0 : i32
    %c0_i32_0 = arith.constant 0 : i32
    return %arg0, %c0_i32 : i32, i32
  }
  func.func @transform_2(%arg0: i32) -> (i32, i32) {
    %c0_i32 = arith.constant 0 : i32
    %c0_i32_0 = arith.constant 0 : i32
    return %arg0, %c0_i32 : i32, i32
  }
}

</mosaic_0001>

<llo_original>
// kernel: tpu_custom_call.1
$region0: #{tpu_custom_call.1}
  #allocation0 [shape = 'u32[]', space=smem, size = 0x4, offset = 0x4, fixed_abs, tag = 'smem constant byte address 0x4 - core index']
  #allocation1 [shape = 'u32[72,128]{1,0:T(1,128)}', space=vmem, size = 0x9000, scoped, tag = 'internal scratch']
  %s0 = inlined_call_operand.vmem [shape: f32[8,16], index: 0, kind: input, shape index: {}]
  %s1 = inlined_call_operand.vmem [shape: s32[8,1], index: 1, kind: input, shape index: {}]
  %s2 = inlined_call_operand.vmem [shape: f32[8,1], index: 2, kind: output, shape index: {}]
  %s3 = sld [smem:[#allocation0]]
  $region18: #{tpu_custom_call.1} parent=0
    _
  %s5 = ssub.s32 1, %s3
  %s6 = scalar_select 0, %s5, %s3
  // Predicated region
  $region2: #{tpu_custom_call.1} parent=0 // pred_check
    _
  $region3: #{tpu_custom_call.1} parent=0 // pred_check_branch
    %8 = sbr.rel (0) target = $region5
  $region4: #{tpu_custom_call.1} parent=0 // pred_region
    _
  $region5: #{tpu_custom_call.1} parent=0 // pred_fallthru
    _
  // Predicated region
  $region6: #{tpu_custom_call.1} parent=0 // pred_check
    _
  $region7: #{tpu_custom_call.1} parent=0 // pred_check_branch
    %10 = sbr.rel (0) target = $region9
  $region8: #{tpu_custom_call.1} parent=0 // pred_region
    _
  $region9: #{tpu_custom_call.1} parent=0 // pred_fallthru
    _
  %v11 = vld [vmem:[%s0] sm:$0xff]
  %v12 = vld [vmem:[%s1] sm:$0xff]
  %v13 = vlaneseq
  %v14 = vand.u32 %v13, 127
  %15 = vset.pattern.permute.xlu0 0
  %16 = vperm.xlu0 %15, %v12
  %v17 = vpop.permute.xlu0 %16
  %vm18 = vcmp.eq.s32.totalorder %v14, %v17
  %v19 = vsel %vm18, %v11, 0.0
  %vm20 = vcmask 130048
  %v21 = vsel %vm20, %v19, 0.0
  %22 = vadd.xlane.f32.xlu0 %v21
  %v23 = vpop.xlane.xlu0 %22
  %v24 = vsel %vm18, -10000.0, %v11
  %v25 = vsel %vm20, %v24, -inf
  %26 = vmax.xlane.f32.xlu0 %v25
  %v27 = vpop.xlane.xlu0 %26
  %v28 = vsub.f32 %v27, %v23
  %v29 = vadd.f32 %v28, 0.5
  %v30 = vmax.f32 %v29, 0.0
  %vm31 = vcmask 7168
  %32 = vst.msk [vmem:[%s2] sm:$0xff] %vm31, %v30
  // Predicated region
  $region10: #{tpu_custom_call.1} parent=0 // pred_check
    _
  $region11: #{tpu_custom_call.1} parent=0 // pred_check_branch
    %34 = sbr.rel (0) target = $region13
  $region12: #{tpu_custom_call.1} parent=0 // pred_region
    _
  $region13: #{tpu_custom_call.1} parent=0 // pred_fallthru
    _
  // Predicated region
  $region14: #{tpu_custom_call.1} parent=0 // pred_check
    _
  $region15: #{tpu_custom_call.1} parent=0 // pred_check_branch
    %36 = sbr.rel (0) target = $region17
  $region16: #{tpu_custom_call.1} parent=0 // pred_region
    _
  $region17: #{tpu_custom_call.1} parent=0 // pred_fallthru
    _

</llo_original>
